<compile_context>
chip_gen: v7x
topology: tpu7x:2x2x1
jax: 0.10.0
libtpu: 0.0.40
codegen_flags: <defaults>
</compile_context>

<pallas_src>
import functools

import jax
import jax.numpy as jnp
from jax.experimental import pallas as pl
from jax.experimental.pallas import tpu as pltpu

H = 16
W = 16
HW = H * W
C_PAD = 8          # conv1 input channels padded 4 -> 8 (sublane alignment)
B_TILE_DEFAULT = 8 # images per grid step (see VMEM note above)


# ----------------------------------------------------------------------------
# pltpu.roll direction probe (one tiny kernel, run once, cached).
# ----------------------------------------------------------------------------
def _roll_probe_kernel(x_ref, o_ref):
    o_ref[...] = pltpu.roll(x_ref[...], 1, 1)


_ROLL_SIGN = None


def _get_roll_sign():
    """Returns s such that pltpu.roll(x, (s*off) % n, axis)[p] == x[(p+off) % n]."""
    global _ROLL_SIGN
    if _ROLL_SIGN is None:
        x = jnp.arange(8 * 128, dtype=jnp.float32).reshape(8, 128)
        y = pl.pallas_call(
            _roll_probe_kernel,
            out_shape=jax.ShapeDtypeStruct((8, 128), jnp.float32),
        )(x)
        first = float(y[0, 0])
        if first == 127.0:      # out[i] = in[i - shift]  (jnp.roll convention)
            _ROLL_SIGN = -1
        elif first == 1.0:      # out[i] = in[i + shift]
            _ROLL_SIGN = 1
        else:
            raise AssertionError(f"unexpected pltpu.roll behavior: {first}")
    return _ROLL_SIGN


# ----------------------------------------------------------------------------
# Kernel: one block of B_TILE images per grid step.
# ----------------------------------------------------------------------------
def value_net_kernel(x_ref, w1_ref, b1_ref, w2_ref, b2_ref, w3_ref, b3_ref,
                     wfct_ref, bfc_ref, o_ref, col_ref, *, roll_sign, b_tile):
    # x_ref:   (C_PAD, B*HW)   raw input block (channels zero-padded to 8).
    # w*_ref:  (Cout, 9*Cin) flattened conv weights; b*_ref: (Cout, 1).
    # wfct_ref:(32, 1) fc weight (transposed); bfc_ref: (1, 1).
    # o_ref:   (8, 128) output tile; image b's value at row 0 / lane b
    #          (broadcast down sublanes -> full-width unmasked store).
    # col_ref: (144, B*HW) VMEM scratch for the im2col of the current layer.
    lanes = b_tile * HW

    # 3x3 tap table (lane shift + border mask), built once, shared by all
    # three conv layers.  Masks use (pos % HW): circular rolls that cross an
    # image boundary are exactly the out-of-bounds taps and get zeroed.
    pos = jax.lax.broadcasted_iota(jnp.int32, (1, lanes), 1)
    phw = pos % HW
    hh = phw // W
    ww = phw % W
    taps = []
    for dh in range(3):
        for dw in range(3):
            oh, ow = dh - 1, dw - 1
            if oh == 0 and ow == 0:
                taps.append((0, None))                          # center tap
                continue
            shift = (roll_sign * (oh * W + ow)) % lanes
            valid = ((hh + oh >= 0) & (hh + oh < H) &
                     (ww + ow >= 0) & (ww + ow < W))
            taps.append((shift, valid.astype(jnp.float32)))     # (1, lanes)

    def conv3x3_relu(act, cin, w_ref, b_ref):
        # act: (cin, lanes).  Store each rolled+masked tap straight into the
        # VMEM col scratch at its static 8-aligned row offset, then one MXU
        # matmul (Cout, 9*cin) @ (9*cin, lanes).
        for t, (shift, mask) in enumerate(taps):
            v = act if shift == 0 else pltpu.roll(act, shift, 1)
            if mask is not None:
                v = v * mask
            col_ref[pl.ds(t * cin, cin), :] = v
        acc = jnp.dot(w_ref[...], col_ref[pl.ds(0, 9 * cin), :],
                      preferred_element_type=jnp.float32)
        return jnp.maximum(acc + b_ref[...], 0.0)               # (Cout, lanes)

    h = conv3x3_relu(x_ref[...], C_PAD, w1_ref, b1_ref)         # (16, lanes)
    h = conv3x3_relu(h, 16, w2_ref, b2_ref)                     # (16, lanes)
    h = conv3x3_relu(h, 16, w3_ref, b3_ref)                     # (32, lanes)

    # Per-image global spatial max (aligned 256-lane slices) + Linear(32, 1),
    # packed lane-dense into row 0 of the output tile.
    lane_idx = jax.lax.broadcasted_iota(jnp.int32, (1, 128), 1)
    vals = jnp.zeros((1, 128), jnp.float32)
    for b in range(b_tile):
        seg = h[:, b * HW:(b + 1) * HW]                         # (32, 256)
        pooled = jnp.max(seg, axis=1, keepdims=True)            # (32, 1)
        v = jnp.sum(pooled * wfct_ref[...], axis=0, keepdims=True) \
            + bfc_ref[...]                                      # (1, 1)
        vals = jnp.where(lane_idx == b, v, vals)
    o_ref[...] = jnp.broadcast_to(vals, (8, 128))


# ----------------------------------------------------------------------------
# Parameter prep (done once, outside the hot path).
# ----------------------------------------------------------------------------
def _flatten_conv_weight(w_hwio):
    # (3, 3, Cin, Cout) -> (Cout, 9*Cin), K ordered as (dh*3 + dw)*Cin + ci.
    cout = w_hwio.shape[-1]
    return jnp.transpose(w_hwio, (3, 0, 1, 2)).reshape(cout, -1)


def prepare_params(params):
    """params: (w1,b1,w2,b2,w3,b3,wfc,bfc) with conv weights in HWIO layout."""
    w1, b1, w2, b2, w3, b3, wfc, bfc = params
    cin1 = w1.shape[2]
    w1p = jnp.pad(w1, ((0, 0), (0, 0), (0, C_PAD - cin1), (0, 0)))
    return (
        _flatten_conv_weight(w1p), b1.reshape(-1, 1),   # (16, 72),  (16, 1)
        _flatten_conv_weight(w2), b2.reshape(-1, 1),    # (16, 144), (16, 1)
        _flatten_conv_weight(w3), b3.reshape(-1, 1),    # (32, 144), (32, 1)
        jnp.asarray(wfc).T, jnp.asarray(bfc).reshape(1, 1),  # (32, 1), (1, 1)
    )


def _const_spec(a):
    zeros = (0,) * a.ndim
    return pl.BlockSpec(a.shape, lambda b, zeros=zeros: zeros)


# ----------------------------------------------------------------------------
# Forward.
# ----------------------------------------------------------------------------
@functools.partial(jax.jit, static_argnames=("b_tile", "roll_sign"))
def _value_net_forward_impl(x_nchw, prepared, b_tile, roll_sign):
    w1f, b1c, w2f, b2c, w3f, b3c, wfct, bfc = prepared
    n, c, h, w = x_nchw.shape
    assert h == H and w == W and c <= C_PAD

    num_blocks = -(-n // b_tile)          # ceil(n / b_tile)
    n_pad = num_blocks * b_tile
    lanes = b_tile * HW

    # Raw input packed as (C_PAD, n_pad*HW): lanes ordered (image, position).
    xp = jnp.transpose(x_nchw, (1, 0, 2, 3)).reshape(c, n * HW)
    xp = jnp.pad(xp, ((0, C_PAD - c), (0, (n_pad - n) * HW)))

    inputs = (xp, w1f, b1c, w2f, b2c, w3f, b3c, wfct, bfc)

    in_specs = [pl.BlockSpec((C_PAD, lanes), lambda b: (0, b))]
    in_specs += [_const_spec(a) for a in inputs[1:]]

    flops = int(2 * lanes * (16 * 9 * C_PAD + 16 * 9 * 16 + 32 * 9 * 16)
                * num_blocks)
    bytes_accessed = int(4 * (xp.size + sum(a.size for a in inputs[1:])
                              + num_blocks * 8 * 128))

    out = pl.pallas_call(
        functools.partial(value_net_kernel, roll_sign=roll_sign, b_tile=b_tile),
        out_shape=jax.ShapeDtypeStruct((num_blocks * 8, 128), jnp.float32),
        grid=(num_blocks,),
        in_specs=in_specs,
        out_specs=pl.BlockSpec((8, 128), lambda b: (b, 0)),
        scratch_shapes=[pltpu.VMEM((9 * 16, lanes), jnp.float32)],
        compiler_params=pltpu.CompilerParams(
            dimension_semantics=("parallel",),
            vmem_limit_bytes=32 * 1024 * 1024),
        cost_estimate=pl.CostEstimate(
            flops=flops, transcendentals=0, bytes_accessed=bytes_accessed),
    )(*inputs)

    # Values are lane-dense: block b, row 0, lanes [0, b_tile).
    vals = out.reshape(num_blocks, 8, 128)[:, 0, :b_tile].reshape(n_pad)
    return vals[:n].reshape(n, 1)


def value_net_forward(x_nchw, prepared, b_tile=B_TILE_DEFAULT):
    """x_nchw: (N, C, 16, 16) float32 (PyTorch layout). Returns (N, 1) f32."""
    n = x_nchw.shape[0]
    b_tile = max(1, min(b_tile, n, 128))
    return _value_net_forward_impl(x_nchw, prepared, b_tile=b_tile,
                                   roll_sign=_get_roll_sign())


# ----------------------------------------------------------------------------
# Pure-JAX reference matching the PyTorch forward.
# ----------------------------------------------------------------------------
def reference_forward(x_nchw, params):
    w1, b1, w2, b2, w3, b3, wfc, bfc = params
    x = jnp.transpose(x_nchw, (0, 2, 3, 1))  # NHWC

    def conv(hh, ww, bb):
        y = jax.lax.conv_general_dilated(
            hh, ww, window_strides=(1, 1), padding="SAME",
            dimension_numbers=("NHWC", "HWIO", "NHWC"))
        return jax.nn.relu(y + bb.reshape(1, 1, 1, -1))

    h = conv(x, w1, b1)
    h = conv(h, w2, b2)
    h = conv(h, w3, b3)
    pooled = jnp.max(h, axis=(1, 2))          # (N, 32) == amax(-1).amax(-1)
    return pooled @ wfc.T + bfc               # (N, 1)


if __name__ == "__main__":
    N, C = 2, 4  # obs_shape = (4, 16, 16)

    key = jax.random.PRNGKey(0)
    keys = jax.random.split(key, 9)

    def init(k, shape, scale=0.1):
        return scale * jax.random.normal(k, shape, jnp.float32)

    x = jax.random.normal(keys[0], (N, C, H, W), jnp.float32)

    # Parameters in HWIO conv layout (== PyTorch (Cout,Cin,kh,kw).transpose(2,3,1,0)),
    # biases (Cout,), fc weight (1,32) (PyTorch Linear(32,1).weight), fc bias (1,1).
    w1 = init(keys[1], (3, 3, C, 16))
    b1 = init(keys[2], (16,))
    w2 = init(keys[3], (3, 3, 16, 16))
    b2 = init(keys[4], (16,))
    w3 = init(keys[5], (3, 3, 16, 32))
    b3 = init(keys[6], (32,))
    wfc = init(keys[7], (1, 32))
    bfc = init(keys[8], (1, 1))
    params = (w1, b1, w2, b2, w3, b3, wfc, bfc)
    prepared = prepare_params(params)

    # Main check: batch 2 in a single lane-batched grid block.
    out = value_net_forward(x, prepared)
    jax.block_until_ready(out)
    assert out.shape == (N, 1) and out.dtype == jnp.float32
    ref = reference_forward(x, params)
    assert jnp.allclose(out, ref, atol=1e-4, rtol=1e-4), (out, ref)

    # Extra check: ragged batch (N=5, b_tile=2 -> 3 grid blocks, last padded).
    x2 = jax.random.normal(jax.random.PRNGKey(1), (5, C, H, W), jnp.float32)
    out2 = value_net_forward(x2, prepared, b_tile=2)
    jax.block_until_ready(out2)
    ref2 = reference_forward(x2, params)
    assert out2.shape == (5, 1)
    assert jnp.allclose(out2, ref2, atol=1e-4, rtol=1e-4), (out2, ref2)

    print("KERNEL_OK")
</pallas_src>

<mosaic_0001>
module attributes {stable_mosaic.version = 11 : i64} {
  func.func @_roll_probe_kernel(%arg0: memref<8x128xf32, #tpu.memory_space<vmem>>, %arg1: memref<8x128xf32, #tpu.memory_space<vmem>>) attributes {dimension_semantics = [], scalar_prefetch = 0 : i64, scratch_operands = 0 : i64, tpu.core_type = #tpu.core_type<tc>} {
    %c0 = arith.constant 0 : index
    %c0_0 = arith.constant 0 : index
    %0 = vector.load %arg0[%c0, %c0_0] : memref<8x128xf32, #tpu.memory_space<vmem>>, vector<8x128xf32>
    %c1_i32 = arith.constant 1 : i32
    %1 = tpu.dynamic_rotate %0 by %c1_i32 dim 1 : vector<8x128xf32>, i32 -> vector<8x128xf32>
    %c0_1 = arith.constant 0 : index
    %c0_2 = arith.constant 0 : index
    %2 = vector.load %arg1[%c0_1, %c0_2] : memref<8x128xf32, #tpu.memory_space<vmem>>, vector<8x128xf32>
    tpu.vector_store %arg1[%c0_1, %c0_2], %1 {strides = array<i32>} : memref<8x128xf32, #tpu.memory_space<vmem>>, vector<8x128xf32>,
    return
  }
}

</mosaic_0001>

<llo_original>
// kernel: tpu_custom_call.1
$region0: #{tpu_custom_call.1}
  #allocation0 [shape = 'u32[]', space=smem, size = 0x4, offset = 0x4, fixed_abs, tag = 'smem constant byte address 0x4 - core index']
  #allocation1 [shape = 'u32[144,128]{1,0:T(1,128)}', space=vmem, size = 0x12000, scoped, tag = 'internal scratch']
  %s0 = inlined_call_operand.hbm [shape: f32[8,128], index: 0, kind: input, shape index: {}]
  %s1 = inlined_call_operand.hbm [shape: f32[8,128], index: 1, kind: output, shape index: {}]
  %s2 = sld [smem:[#allocation0]]
  $region18: #{tpu_custom_call.1} parent=0
    _
  %s4 = ssub.s32 1, %s2
  %s5 = scalar_select 0, %s4, %s2
  $region1: #{tpu_custom_call.1} parent=0
    #allocation2 [shape = 'u8[4096]{0}', space=vmem, size = 0x1000, scoped, tag = 'input window, operand 0, single buffered']
    #allocation3 [shape = 's32[1]{0}', space=sflag, size = 0x4, scoped, tag = 'scoped memory for tpu_custom_call.1']
    #allocation4 [shape = 's32[1]{0}', space=sflag, size = 0x4, scoped, tag = 'scoped memory for tpu_custom_call.1']
    #allocation5 [shape = 'u8[4096]{0}', space=vmem, size = 0x1000, scoped, tag = 'output window, operand 0, single buffered']
    %6 = vsyncpa [#allocation3], 0
    %7 = vsyncpa [#allocation4], 0
    // Predicated region
    $region2: #{tpu_custom_call.1} parent=1 // pred_check
      _
    $region3: #{tpu_custom_call.1} parent=1 // pred_check_branch
      %9 = sbr.rel (0) target = $region5
    $region4: #{tpu_custom_call.1} parent=1 // pred_region
      %s11 = ssub.s32 128, 128
      %12 = vsyncadd [#allocation3], %s11
      %s14 = sshll.u32 [#allocation2], 4
      %s15 = int_to_ptr.vmem [resolvable:$true] %s14
      %17 = dma.hbm_to_vmem [thread:$0]  %s0, 128, %s15, [#allocation3]
    $region5: #{tpu_custom_call.1} parent=1 // pred_fallthru
      _
    // Predicated region
    $region6: #{tpu_custom_call.1} parent=1 // pred_check
      _
    $region7: #{tpu_custom_call.1} parent=1 // pred_check_branch
      %19 = sbr.rel (0) target = $region9
    $region8: #{tpu_custom_call.1} parent=1 // pred_region
      %20 = dma.done [#allocation3], 128
    $region9: #{tpu_custom_call.1} parent=1 // pred_fallthru
      _
    %v21 = vld [vmem:[#allocation2] sm:$0xff]
    %22 = vrot.lane.b32.xlu0 %v21, 1
    %v23 = vpop.permute.xlu0 %22
    %24 = vst [vmem:[#allocation5] sm:$0xff] %v23
    // Predicated region
    $region10: #{tpu_custom_call.1} parent=1 // pred_check
      _
    $region11: #{tpu_custom_call.1} parent=1 // pred_check_branch
      %26 = sbr.rel (0) target = $region13
    $region12: #{tpu_custom_call.1} parent=1 // pred_region
      %s28 = ssub.s32 128, 128
      %29 = vsyncadd [#allocation4], %s28
      %s31 = sshll.u32 [#allocation5], 4
      %s32 = int_to_ptr.vmem [resolvable:$true] %s31
      %34 = dma.vmem_to_hbm [thread:$0]  %s32, 128, %s1, [#allocation4]
    $region13: #{tpu_custom_call.1} parent=1 // pred_fallthru
      _
    // Predicated region
    $region14: #{tpu_custom_call.1} parent=1 // pred_check
      _
    $region15: #{tpu_custom_call.1} parent=1 // pred_check_branch
      %36 = sbr.rel (0) target = $region17
    $region16: #{tpu_custom_call.1} parent=1 // pred_region
      %37 = dma.done [#allocation4], 128
    $region17: #{tpu_custom_call.1} parent=1 // pred_fallthru
      _
    %38 = vsyncpa [#allocation3], 1
    %39 = vsyncpa [#allocation4], 1

</llo_original>
